<compile_context>
chip_gen: v7x
topology: tpu7x:2x2x1
jax: 0.10.0
libtpu: 0.0.40
codegen_flags: <defaults>
</compile_context>

<pallas_src>
import functools
import math

import jax
import jax.numpy as jnp
from jax.experimental import pallas as pl
from jax.experimental.pallas import tpu as pltpu


_TM, _TN, _TK = 512, 512, 1024  # defaults (f32); all multiples of 256 / 128.


def _mlp_kernel_direct(x_ref, w_ref, b_ref, o_ref):
    """f32 output: accumulate directly into the resident output tile."""
    k = pl.program_id(2)

    @pl.when(k == 0)
    def _init():
        o_ref[...] = jnp.zeros_like(o_ref)

    o_ref[...] += jnp.dot(
        x_ref[...], w_ref[...], preferred_element_type=jnp.float32
    )

    @pl.when(k == pl.num_programs(2) - 1)
    def _epilogue():
        y = o_ref[...] + b_ref[...].astype(jnp.float32)
        o_ref[...] = y * jax.nn.sigmoid(y)


def _mlp_kernel_acc(x_ref, w_ref, b_ref, o_ref, acc_ref):
    """Narrow output dtype (e.g. bf16): f32 scratch accumulator + cast at end."""
    k = pl.program_id(2)

    @pl.when(k == 0)
    def _init():
        acc_ref[...] = jnp.zeros_like(acc_ref)

    acc_ref[...] += jnp.dot(
        x_ref[...], w_ref[...], preferred_element_type=jnp.float32
    )

    @pl.when(k == pl.num_programs(2) - 1)
    def _epilogue():
        y = acc_ref[...] + b_ref[...].astype(jnp.float32)
        o_ref[...] = (y * jax.nn.sigmoid(y)).astype(o_ref.dtype)


def _round_up(x: int, m: int) -> int:
    return ((x + m - 1) // m) * m


def prepare_mlp_params(w, b, *, tn=_TN, tk=_TK, dtype=None):
    """Pad (and optionally cast, e.g. to bf16) Linear params ONCE at load time.

    w: [K, N] (transposed from PyTorch's [N, K]); b: [N].
    Returns (w_padded [Kp, Np], b_padded [1, Np], out_features).  Pass
    `out_features=out_features` to mlp_layer so the per-call weight pad/cast
    (a full HBM read+write of the weight) is skipped.
    """
    K, N = w.shape
    tk_e = min(tk, _round_up(K, 128))
    tn_e = min(tn, _round_up(N, 128))
    Kp = _round_up(K, tk_e)
    Np = _round_up(N, tn_e)
    w_p = jnp.pad(w, ((0, Kp - K), (0, Np - N)))
    b_p = jnp.pad(b.reshape(1, -1), ((0, 0), (0, Np - N)))
    if dtype is not None:
        w_p = w_p.astype(dtype)
    return w_p, b_p, N


@functools.partial(jax.jit, static_argnames=("tm", "tn", "tk", "out_features"))
def mlp_layer(x, w, b, *, tm=_TM, tn=_TN, tk=_TK, out_features=None):
    """silu(x @ w + b); Linear acts on the last dim of x.

    x: [..., K]
    w: [K, N] (or pre-padded [Kp, Np] from prepare_mlp_params, with
       out_features=N passed explicitly)
    b: [N] / [1, N] (or pre-padded [1, Np])
    returns [..., N] in x.dtype.
    """
    assert tm % 8 == 0 and tn % 128 == 0 and tk % 128 == 0

    *lead, K = x.shape
    if out_features is None:
        Kw, N = w.shape
        assert Kw == K, (Kw, K)
    else:
        N = out_features

    M = math.prod(lead) if lead else 1
    x2 = x.reshape(M, K)

    # Effective tiles: obey (8, 128) layout but never exceed the padded
    # problem, so tiny shapes stay tiny.
    tm_e = min(tm, _round_up(M, 8))
    tk_e = min(tk, _round_up(K, 128))
    tn_e = min(tn, _round_up(N, 128))

    Mp = _round_up(M, tm_e)
    Kp = _round_up(K, tk_e)
    Np = _round_up(N, tn_e)

    # Megacore (v7x has 2 TensorCores): if enlarged tiles swallow both
    # "parallel" axes, split N so at least one parallel axis has >=2 blocks.
    if Mp // tm_e == 1 and Np // tn_e == 1 and Np >= 256:
        tn_e = _round_up(Np // 2, 128)
        while Np % tn_e:
            tn_e -= 128

    # Zero padding is exact: padded K contributes 0 to the dot; padded rows /
    # cols of the output are sliced off below.  Padding x (activations) is
    # cheap; the weight pad/cast is hoisted out via prepare_mlp_params.
    x_p = jnp.pad(x2, ((0, Mp - M), (0, Kp - K)))
    if out_features is None:
        w_p = jnp.pad(w, ((0, Kp - K), (0, Np - N)))
        b_p = jnp.pad(b.reshape(1, N), ((0, 0), (0, Np - N)))
    else:
        assert w.shape == (Kp, Np), (w.shape, (Kp, Np))
        w_p = w
        b_p = b.reshape(1, Np)

    grid = (Mp // tm_e, Np // tn_e, Kp // tk_e)

    out_dtype = x.dtype
    use_acc = jnp.dtype(out_dtype) != jnp.dtype(jnp.float32)
    kernel = _mlp_kernel_acc if use_acc else _mlp_kernel_direct
    scratch = [pltpu.VMEM((tm_e, tn_e), jnp.float32)] if use_acc else []

    x_item = jnp.dtype(x.dtype).itemsize
    w_item = jnp.dtype(w_p.dtype).itemsize
    b_item = jnp.dtype(b_p.dtype).itemsize
    o_item = jnp.dtype(out_dtype).itemsize

    # bytes_accessed counts the tiling re-reads: x is streamed grid_n times,
    # w is streamed grid_m times.
    cost = pl.CostEstimate(
        flops=2 * Mp * Kp * Np,
        transcendentals=Mp * Np,  # sigmoid exp in the epilogue
        bytes_accessed=(
            Mp * Kp * x_item * grid[1]
            + Kp * Np * w_item * grid[0]
            + Np * b_item
            + Mp * Np * o_item
        ),
    )

    # VMEM working set: double-buffered inputs + output tile (+ f32 scratch).
    vmem_est = (
        2 * (tm_e * tk_e * x_item + tk_e * tn_e * w_item + tn_e * b_item)
        + 2 * tm_e * tn_e * o_item
        + (tm_e * tn_e * 4 if use_acc else 0)
    )
    vmem_limit = None
    if vmem_est > (12 << 20):
        # Raise the scoped limit (v5e default is 16 MiB) but stay well under
        # v7x's 64 MiB physical VMEM.
        vmem_limit = min(vmem_est + (8 << 20), 48 << 20)

    out_p = pl.pallas_call(
        kernel,
        out_shape=jax.ShapeDtypeStruct((Mp, Np), out_dtype),
        grid_spec=pltpu.PrefetchScalarGridSpec(
            num_scalar_prefetch=0,
            grid=grid,
            in_specs=[
                pl.BlockSpec((tm_e, tk_e), lambda i, j, k: (i, k)),  # x tile
                pl.BlockSpec((tk_e, tn_e), lambda i, j, k: (k, j)),  # w tile
                pl.BlockSpec((1, tn_e), lambda i, j, k: (0, j)),     # bias tile
            ],
            out_specs=pl.BlockSpec((tm_e, tn_e), lambda i, j, k: (i, j)),
            scratch_shapes=scratch,
        ),
        compiler_params=pltpu.CompilerParams(
            dimension_semantics=("parallel", "parallel", "arbitrary"),
            vmem_limit_bytes=vmem_limit,
        ),
        cost_estimate=cost,
    )(x_p, w_p, b_p)

    out = out_p[:M, :N]
    return out.reshape(*lead, N)


if __name__ == "__main__":
    key = jax.random.PRNGKey(0)

    def make_params(key, in_features, out_features):
        kw, kb = jax.random.split(key)
        # PyTorch nn.Linear default init, weight stored transposed as [in, out].
        bound = 1.0 / (in_features ** 0.5)
        w = jax.random.uniform(
            kw, (in_features, out_features), jnp.float32, minval=-bound, maxval=bound
        )
        b = jax.random.uniform(
            kb, (out_features,), jnp.float32, minval=-bound, maxval=bound
        )
        return w, b

    def ref_mlp(x, w, b):
        y = x.astype(jnp.float32) @ w.astype(jnp.float32) + b.astype(jnp.float32)
        return y * jax.nn.sigmoid(y)

    k1, k2, k3, k4, k5, k6 = jax.random.split(key, 6)

    # --- Test 1: small module-spec shapes (batch=2, seq=7, in=32, out=64);
    #             exercises padding and the direct-into-output f32 path. ---
    w1, b1 = make_params(k1, 32, 64)
    x1 = jax.random.normal(k2, (2, 7, 32), jnp.float32)
    out1 = mlp_layer(x1, w1, b1)
    jax.block_until_ready(out1)
    assert out1.shape == (2, 7, 64)
    assert jnp.allclose(out1, ref_mlp(x1, w1, b1), atol=1e-5, rtol=1e-5)

    # --- Test 2: multi-step 3-D grid (M, N, K all tiled) with explicit small
    #             tiles and non-aligned shapes. ---
    w2, b2 = make_params(k3, 320, 384)
    x2 = jax.random.normal(k4, (3, 100, 320), jnp.float32)
    out2 = mlp_layer(x2, w2, b2, tm=128, tn=256, tk=128)
    jax.block_until_ready(out2)
    assert out2.shape == (3, 100, 384)
    assert jnp.allclose(out2, ref_mlp(x2, w2, b2), atol=1e-4, rtol=1e-4)

    # --- Test 3: bf16 activations + weights pre-cast/pre-padded ONCE at load
    #             time (prepare_mlp_params), f32 accumulate + f32 SiLU epilogue
    #             (scratch-accumulator path), bf16 output. ---
    w3, b3 = make_params(k5, 256, 384)
    w3_p, b3_p, n3 = prepare_mlp_params(w3, b3, dtype=jnp.bfloat16)
    x3 = jax.random.normal(k6, (4, 32, 256), jnp.float32).astype(jnp.bfloat16)
    out3 = mlp_layer(x3, w3_p, b3_p, out_features=n3)
    jax.block_until_ready(out3)
    assert out3.shape == (4, 32, 384)
    assert out3.dtype == jnp.bfloat16
    ref3 = ref_mlp(x3, w3_p[:256, :384], b3)
    assert jnp.allclose(out3.astype(jnp.float32), ref3, atol=2e-2, rtol=2e-2)

    print("KERNEL_OK")
</pallas_src>

<mosaic_0001>
module attributes {stable_mosaic.version = 11 : i64} {
  func.func @_mlp_kernel_direct(%arg0: i32, %arg1: i32, %arg2: i32, %arg3: memref<16x128xf32, #tpu.memory_space<vmem>>, %arg4: memref<128x128xf32, #tpu.memory_space<vmem>>, %arg5: memref<1x128xf32, #tpu.memory_space<vmem>>, %arg6: memref<16x128xf32, #tpu.memory_space<vmem>>) attributes {dimension_semantics = [#tpu.dimension_semantics<parallel>, #tpu.dimension_semantics<parallel>, #tpu.dimension_semantics<arbitrary>], iteration_bounds = array<i64: 1, 1, 1>, scalar_prefetch = 0 : i64, scratch_operands = 0 : i64, tpu.core_type = #tpu.core_type<tc>, window_params = [{transform_indices = @transform_0, window_bounds = array<i64: 16, 128>}, {transform_indices = @transform_1, window_bounds = array<i64: 128, 128>}, {transform_indices = @transform_2, window_bounds = array<i64: 1, 128>}, {transform_indices = @transform_3, window_bounds = array<i64: 16, 128>}]} {
    %c0_i32 = arith.constant 0 : i32
    %0 = arith.cmpi eq, %arg2, %c0_i32 : i32
    %1 = arith.extui %0 : i1 to i32
    %c0_i32_0 = arith.constant 0 : i32
    %2 = arith.cmpi ne, %1, %c0_i32_0 : i32
    scf.if %2 {
      %cst_10 = arith.constant 0.000000e+00 : f32
      %12 = vector.broadcast %cst_10 : f32 to vector<16x128xf32>
      %c0_11 = arith.constant 0 : index
      %c0_12 = arith.constant 0 : index
      %13 = vector.load %arg6[%c0_11, %c0_12] : memref<16x128xf32, #tpu.memory_space<vmem>>, vector<16x128xf32>
      tpu.vector_store %arg6[%c0_11, %c0_12], %12 {strides = array<i32>} : memref<16x128xf32, #tpu.memory_space<vmem>>, vector<16x128xf32>,
    } else {
    }
    %c0 = arith.constant 0 : index
    %c0_1 = arith.constant 0 : index
    %3 = vector.load %arg6[%c0, %c0_1] : memref<16x128xf32, #tpu.memory_space<vmem>>, vector<16x128xf32>
    %c0_2 = arith.constant 0 : index
    %c0_3 = arith.constant 0 : index
    %4 = vector.load %arg3[%c0_2, %c0_3] : memref<16x128xf32, #tpu.memory_space<vmem>>, vector<16x128xf32>
    %c0_4 = arith.constant 0 : index
    %c0_5 = arith.constant 0 : index
    %5 = vector.load %arg4[%c0_4, %c0_5] : memref<128x128xf32, #tpu.memory_space<vmem>>, vector<128x128xf32>
    %cst = arith.constant dense<0.000000e+00> : vector<16x128xf32>
    %6 = tpu.matmul %4, %5, %cst {dimension_numbers = #tpu.dot_dimension_numbers<[1], [0], [0], [1], [0, 0, 1, 1], [], []>} : vector<16x128xf32>, vector<128x128xf32>, vector<16x128xf32> -> vector<16x128xf32>
    %7 = arith.addf %3, %6 : vector<16x128xf32>
    %c0_6 = arith.constant 0 : index
    %c0_7 = arith.constant 0 : index
    %8 = vector.load %arg6[%c0_6, %c0_7] : memref<16x128xf32, #tpu.memory_space<vmem>>, vector<16x128xf32>
    tpu.vector_store %arg6[%c0_6, %c0_7], %7 {strides = array<i32>} : memref<16x128xf32, #tpu.memory_space<vmem>>, vector<16x128xf32>,
    %c0_i32_8 = arith.constant 0 : i32
    %9 = arith.cmpi eq, %arg2, %c0_i32_8 : i32
    %10 = arith.extui %9 : i1 to i32
    %c0_i32_9 = arith.constant 0 : i32
    %11 = arith.cmpi ne, %10, %c0_i32_9 : i32
    scf.if %11 {
      %c0_10 = arith.constant 0 : index
      %c0_11 = arith.constant 0 : index
      %12 = vector.load %arg6[%c0_10, %c0_11] : memref<16x128xf32, #tpu.memory_space<vmem>>, vector<16x128xf32>
      %c0_12 = arith.constant 0 : index
      %c0_13 = arith.constant 0 : index
      %13 = vector.load %arg5[%c0_12, %c0_13] : memref<1x128xf32, #tpu.memory_space<vmem>>, vector<1x128xf32>
      %14 = vector.broadcast %13 : vector<1x128xf32> to vector<16x128xf32>
      %15 = arith.addf %12, %14 : vector<16x128xf32>
      %16 = arith.negf %15 : vector<16x128xf32>
      %17 = math.exp %16 : vector<16x128xf32>
      %cst_14 = arith.constant 1.000000e+00 : f32
      %18 = vector.broadcast %cst_14 : f32 to vector<16x128xf32>
      %19 = arith.addf %18, %17 : vector<16x128xf32>
      %20 = arith.divf %18, %19 : vector<16x128xf32>
      %21 = arith.mulf %15, %20 : vector<16x128xf32>
      %c0_15 = arith.constant 0 : index
      %c0_16 = arith.constant 0 : index
      %22 = vector.load %arg6[%c0_15, %c0_16] : memref<16x128xf32, #tpu.memory_space<vmem>>, vector<16x128xf32>
      tpu.vector_store %arg6[%c0_15, %c0_16], %21 {strides = array<i32>} : memref<16x128xf32, #tpu.memory_space<vmem>>, vector<16x128xf32>,
    } else {
    }
    return
  }
  func.func @transform_0(%arg0: i32, %arg1: i32, %arg2: i32) -> (i32, i32) {
    %c0_i32 = arith.constant 0 : i32
    return %arg0, %arg2 : i32, i32
  }
  func.func @transform_1(%arg0: i32, %arg1: i32, %arg2: i32) -> (i32, i32) {
    %c0_i32 = arith.constant 0 : i32
    return %arg2, %arg1 : i32, i32
  }
  func.func @transform_2(%arg0: i32, %arg1: i32, %arg2: i32) -> (i32, i32) {
    %c0_i32 = arith.constant 0 : i32
    %c0_i32_0 = arith.constant 0 : i32
    return %c0_i32, %arg1 : i32, i32
  }
  func.func @transform_3(%arg0: i32, %arg1: i32, %arg2: i32) -> (i32, i32) {
    %c0_i32 = arith.constant 0 : i32
    return %arg0, %arg1 : i32, i32
  }
}

</mosaic_0001>

<llo_original>
// kernel: mlp_layer.1
$region0: #{mlp_layer.1}
  #allocation0 [shape = 'u32[]', space=smem, size = 0x4, offset = 0x4, fixed_abs, tag = 'smem constant byte address 0x4 - core index']
  #allocation1 [shape = 'u32[144,128]{1,0:T(1,128)}', space=vmem, size = 0x12000, scoped, tag = 'internal scratch']
  %s0 = inlined_call_operand.vmem [shape: f32[16,128], index: 0, kind: input, shape index: {}]
  %s1 = inlined_call_operand.vmem [shape: f32[128,128], index: 1, kind: input, shape index: {}]
  %s2 = inlined_call_operand.vmem [shape: f32[1,128], index: 2, kind: input, shape index: {}]
  %s3 = inlined_call_operand.vmem [shape: f32[16,128], index: 3, kind: output, shape index: {}]
  %s4 = sld [smem:[#allocation0]]
  $region30: #{mlp_layer.1} parent=0
    _
  %s6 = ssub.s32 1, %s4
  %s7 = scalar_select 0, %s6, %s4
  // Predicated region
  $region2: #{mlp_layer.1} parent=0 // pred_check
    _
  $region3: #{mlp_layer.1} parent=0 // pred_check_branch
    %9 = sbr.rel (0) target = $region5
  $region4: #{mlp_layer.1} parent=0 // pred_region
    _
  $region5: #{mlp_layer.1} parent=0 // pred_fallthru
    _
  // Predicated region
  $region6: #{mlp_layer.1} parent=0 // pred_check
    _
  $region7: #{mlp_layer.1} parent=0 // pred_check_branch
    %11 = sbr.rel (0) target = $region9
  $region8: #{mlp_layer.1} parent=0 // pred_region
    _
  $region9: #{mlp_layer.1} parent=0 // pred_fallthru
    _
  // Predicated region
  $region10: #{mlp_layer.1} parent=0 // pred_check
    _
  $region11: #{mlp_layer.1} parent=0 // pred_check_branch
    %13 = sbr.rel (0) target = $region13
  $region12: #{mlp_layer.1} parent=0 // pred_region
    _
  $region13: #{mlp_layer.1} parent=0 // pred_fallthru
    _
  %p14 = scmp.eq.s32.totalorder 0, 0
  // Predicated region
  $region14: #{mlp_layer.1} parent=0 // pred_check
    %p15 = pneg %p14
  $region15: #{mlp_layer.1} parent=0 // pred_check_branch
    %17 = sbr.rel (%p15) target = $region17
  $region16: #{mlp_layer.1} parent=0 // pred_region
    %18 = vst [vmem:[%s3] sm:$0xff] 0.0
    %19 = vst [vmem:[%s3 + $0x8] sm:$0xff] 0.0
  $region17: #{mlp_layer.1} parent=0 // pred_fallthru
    _
  %v20 = vld [vmem:[%s3] sm:$0xff]
  %v21 = vld [vmem:[%s3 + $0x8] sm:$0xff]
  %v22 = vld [vmem:[%s0] sm:$0xff]
  %v23 = vld [vmem:[%s0 + $0x8] sm:$0xff]
  %v24 = vld [vmem:[%s1] sm:$0xff]
  %v25 = vld [vmem:[%s1 + $0x8] sm:$0xff]
  %v26 = vld [vmem:[%s1 + $0x10] sm:$0xff]
  %v27 = vld [vmem:[%s1 + $0x18] sm:$0xff]
  %v28 = vld [vmem:[%s1 + $0x20] sm:$0xff]
  %v29 = vld [vmem:[%s1 + $0x28] sm:$0xff]
  %v30 = vld [vmem:[%s1 + $0x30] sm:$0xff]
  %v31 = vld [vmem:[%s1 + $0x38] sm:$0xff]
  %v32 = vld [vmem:[%s1 + $0x40] sm:$0xff]
  %v33 = vld [vmem:[%s1 + $0x48] sm:$0xff]
  %v34 = vld [vmem:[%s1 + $0x50] sm:$0xff]
  %v35 = vld [vmem:[%s1 + $0x58] sm:$0xff]
  %v36 = vld [vmem:[%s1 + $0x60] sm:$0xff]
  %v37 = vld [vmem:[%s1 + $0x68] sm:$0xff]
  %v38 = vld [vmem:[%s1 + $0x70] sm:$0xff]
  %v39 = vld [vmem:[%s1 + $0x78] sm:$0xff]
  %40 = vmatprep.subr.mxu0 0.0
  %41 = vmatpush1.msra.mxu0 %v24
  %42 = vmatprep.subr.mxu0 0.0
  %43 = vmatpush1.msra.mxu0 %v25
  %44 = vmatprep.subr.mxu0 0.0
  %45 = vmatpush1.msra.mxu0 %v26
  %46 = vmatprep.subr.mxu0 0.0
  %47 = vmatpush1.msra.mxu0 %v27
  %48 = vmatprep.subr.mxu0 0.0
  %49 = vmatpush1.msra.mxu0 %v28
  %50 = vmatprep.subr.mxu0 0.0
  %51 = vmatpush1.msra.mxu0 %v29
  %52 = vmatprep.subr.mxu0 0.0
  %53 = vmatpush1.msra.mxu0 %v30
  %54 = vmatprep.subr.mxu0 0.0
  %55 = vmatpush1.msra.mxu0 %v31
  %56 = vmatprep.subr.mxu0 0.0
  %57 = vmatpush1.msra.mxu0 %v32
  %58 = vmatprep.subr.mxu0 0.0
  %59 = vmatpush1.msra.mxu0 %v33
  %60 = vmatprep.subr.mxu0 0.0
  %61 = vmatpush1.msra.mxu0 %v34
  %62 = vmatprep.subr.mxu0 0.0
  %63 = vmatpush1.msra.mxu0 %v35
  %64 = vmatprep.subr.mxu0 0.0
  %65 = vmatpush1.msra.mxu0 %v36
  %66 = vmatprep.subr.mxu0 0.0
  %67 = vmatpush1.msra.mxu0 %v37
  %68 = vmatprep.subr.mxu0 0.0
  %69 = vmatpush1.msra.mxu0 %v38
  %70 = vmatprep.subr.mxu0 0.0
  %71 = vmatpush1.msra.mxu0 %v39
  %72 = vmatprep.subr.mxu0 0.0
  %73 = vmatpush1.msra.mxu0 0.0
  %74 = vmatprep.subr.mxu0 0.0
  %75 = vmatpush1.msra.mxu0 0.0
  %76 = vmatprep.subr.mxu0 0.0
  %77 = vmatpush1.msra.mxu0 0.0
  %78 = vmatprep.subr.mxu0 0.0
  %79 = vmatpush1.msra.mxu0 0.0
  %80 = vmatprep.subr.mxu0 0.0
  %81 = vmatpush1.msra.mxu0 0.0
  %82 = vmatprep.subr.mxu0 0.0
  %83 = vmatpush1.msra.mxu0 0.0
  %84 = vmatprep.subr.mxu0 0.0
  %85 = vmatpush1.msra.mxu0 0.0
  %86 = vmatprep.subr.mxu0 0.0
  %87 = vmatpush1.msra.mxu0 0.0
  %88 = vmatprep.subr.mxu0 0.0
  %89 = vmatpush1.msra.mxu0 0.0
  %90 = vmatprep.subr.mxu0 0.0
  %91 = vmatpush1.msra.mxu0 0.0
  %92 = vmatprep.subr.mxu0 0.0
  %93 = vmatpush1.msra.mxu0 0.0
  %94 = vmatprep.subr.mxu0 0.0
  %95 = vmatpush1.msra.mxu0 0.0
  %96 = vmatprep.subr.mxu0 0.0
  %97 = vmatpush1.msra.mxu0 0.0
  %98 = vmatprep.subr.mxu0 0.0
  %99 = vmatpush1.msra.mxu0 0.0
  %100 = vmatprep.subr.mxu0 0.0
  %101 = vmatpush1.msra.mxu0 0.0
  %102 = vmatprep.subr.mxu0 0.0
  %103 = vmatpush1.msra.mxu0 0.0
  %104 = vmatprep.mubr.f32.mxu0 0.0
  %105 = vmatmul.mubr.f32.gmra.mrb[0].mxu0 %v22
  %v106 = vpop.f32.mrb[0].mxu0
  %v107 = vadd.f32 0.0, %v106
  %v108 = vpop.f32.mrb[0].mxu0
  %109 = vmatprep.mubr.f32.mxu0 0.0
  %110 = vmatmul.mubr.f32.gmra.mrb[0].mxu0 %v23
  %v111 = vpop.f32.mrb[0].mxu0
  %v112 = vadd.f32 0.0, %v111
  %v113 = vpop.f32.mrb[0].mxu0
  %114 = vdwg.mxu0
  %v115 = vadd.f32 %v20, %v107
  %v116 = vadd.f32 %v21, %v112
  %117 = vst [vmem:[%s3] sm:$0xff] %v115
  %118 = vst [vmem:[%s3 + $0x8] sm:$0xff] %v116
  // Predicated region
  $region18: #{mlp_layer.1} parent=0 // pred_check
    %p119 = pneg %p14
  $region19: #{mlp_layer.1} parent=0 // pred_check_branch
    %121 = sbr.rel (%p119) target = $region21
  $region20: #{mlp_layer.1} parent=0 // pred_region
    %v122 = vld [vmem:[%s3] sm:$0xff]
    %v123 = vld [vmem:[%s3 + $0x8] sm:$0xff]
    %v124 = vld [vmem:[%s2] sm:$0x1]
    %v126 = vlaneseq
    %v127 = vshrl.u32 %v126, 7
    %v128 = vsub.s32 0, %v127
    %v129 = vrot.slane %v124, %v128
    %v131 = vadd.f32 %v122, %v129
    %v132 = vadd.f32 %v123, %v129
    %v133 = vxor.u32 %v131, 2147483648
    %v134 = vxor.u32 %v132, 2147483648
    %v135 = vmul.f32 %v133, 1.442695
    %v136 = vpow.pop %v135
    %v137 = vmul.f32 %v134, 1.442695
    %v138 = vpow.pop %v137
    %v139 = vadd.f32 %v136, 1.0
    %v140 = vadd.f32 %v138, 1.0
    %v141 = vrcp.pop %v139
    %v142 = vmul.f32 1.0, %v141
    %v143 = vrcp.pop %v140
    %v144 = vmul.f32 1.0, %v143
    %v145 = vmul.f32 %v131, %v142
    %v146 = vmul.f32 %v132, %v144
    %147 = vst [vmem:[%s3] sm:$0xff] %v145
    %148 = vst [vmem:[%s3 + $0x8] sm:$0xff] %v146
  $region21: #{mlp_layer.1} parent=0 // pred_fallthru
    _
  // Predicated region
  $region22: #{mlp_layer.1} parent=0 // pred_check
    _
  $region23: #{mlp_layer.1} parent=0 // pred_check_branch
    %150 = sbr.rel (0) target = $region25
  $region24: #{mlp_layer.1} parent=0 // pred_region
    _
  $region25: #{mlp_layer.1} parent=0 // pred_fallthru
    _
  // Predicated region
  $region26: #{mlp_layer.1} parent=0 // pred_check
    _
  $region27: #{mlp_layer.1} parent=0 // pred_check_branch
    %152 = sbr.rel (0) target = $region29
  $region28: #{mlp_layer.1} parent=0 // pred_region
    _
  $region29: #{mlp_layer.1} parent=0 // pred_fallthru
    _

</llo_original>
